<compile_context>
chip_gen: v5e
topology: v5e:2x2
jax: 0.10.0
libtpu: 0.0.40
codegen_flags: <defaults>
</compile_context>

<pallas_src>
import re

import jax
import jax.numpy as jnp
from jax.experimental import pallas as pl
from jax.experimental.pallas import tpu as pltpu


def _round_up(x, m):
    return (x + m - 1) // m * m


def _tpu_generation():
    try:
        kind = jax.devices()[0].device_kind
        m = re.search(r"\d+", kind)
        return int(m.group(0)) if m else 0
    except Exception:
        return 0


def _lane_align(dim, generation):
    # v6e/v7x MXUs are 2x256x256 -> align big dims to 256; <=v5e is 4x128x128.
    if generation >= 6 and dim > 128:
        return 256
    return 128


def _patch_embed_kernel(x_ref, w_ref, b_ref, o_ref):
    # x_ref: (tm, Kp) bf16 patch block
    # w_ref: (Kp, Ep) bf16 projection weight (constant index map -> stays resident)
    # b_ref: (1, Ep)  f32 bias
    # o_ref: (tm, Ep) output block in the final dtype
    acc = jnp.dot(x_ref[...], w_ref[...], preferred_element_type=jnp.float32)
    o_ref[...] = (acc + b_ref[...]).astype(o_ref.dtype)


def patch_embedding(im, weight, bias, patch_size, *, compute_dtype=jnp.bfloat16,
                    tile_m=1024, vmem_budget_bytes=20 * 1024 * 1024):
    """im: (B, C, H, W). weight: (E, C, P, P). bias: (E,).
    Returns (B, num_patches, E), matching nn.Conv2d(...).flatten(2).transpose(1,2)."""
    B, C, H, W = im.shape
    E = weight.shape[0]
    P = patch_size
    assert H % P == 0 and W % P == 0, "image dims must be divisible by patch size"
    gh, gw = H // P, W // P
    num_patches = gh * gw
    K = C * P * P
    M = B * num_patches
    out_dtype = im.dtype
    out_itemsize = jnp.dtype(out_dtype).itemsize
    cdt_itemsize = jnp.dtype(compute_dtype).itemsize

    gen = _tpu_generation()
    Kp = _round_up(K, _lane_align(K, gen))
    Ep = _round_up(E, _lane_align(E, gen))

    # --- NCHW -> (M, K) patch rearrange, channel-major (C, kh, kw) flatten.
    # allow_input_fusion below allows XLA to fold this (plus convert/pad) into the
    # kernel's input operand rather than a separate materialized HBM pass.
    patches = im.reshape(B, C, gh, P, gw, P).transpose(0, 2, 4, 1, 3, 5)
    patches = patches.reshape(M, K).astype(compute_dtype)
    if Kp != K:
        patches = jnp.pad(patches, ((0, 0), (0, Kp - K)))

    # Conv2d weight (E, C, P, P) -> dense (K, E); pads touch only tiny params.
    w_mat = weight.reshape(E, K).T.astype(compute_dtype)
    b_mat = bias.reshape(1, E).astype(jnp.float32)
    if Kp != K:
        w_mat = jnp.pad(w_mat, ((0, Kp - K), (0, 0)))
    if Ep != E:
        w_mat = jnp.pad(w_mat, ((0, 0), (0, Ep - E)))
        b_mat = jnp.pad(b_mat, ((0, 0), (0, Ep - E)))

    # --- M tiling: no activation padding; ragged last block is masked by Pallas.
    tm = min(tile_m, _round_up(M, 16))
    if pl.cdiv(M, tm) < 2 and M > 16:
        tm = _round_up(pl.cdiv(M, 2), 16)  # >= 2 grid steps so both v7x TCs work

    def _vmem_footprint(t):
        x_b = 2 * t * Kp * cdt_itemsize       # double-buffered x tile
        w_b = 2 * Kp * Ep * cdt_itemsize      # weight (constant index, 2 bufs)
        b_b = 2 * Ep * 4                      # bias
        o_b = 2 * t * Ep * out_itemsize       # double-buffered output tile
        return x_b + w_b + b_b + o_b

    while tm > 16 and _vmem_footprint(tm) > vmem_budget_bytes:
        tm = max(16, tm // 2)

    grid = (pl.cdiv(M, tm),)

    cost = pl.CostEstimate(
        flops=2 * M * Kp * Ep,
        transcendentals=0,
        bytes_accessed=(M * Kp * cdt_itemsize
                        + Kp * Ep * cdt_itemsize
                        + Ep * 4
                        + M * Ep * out_itemsize),
    )

    out = pl.pallas_call(
        _patch_embed_kernel,
        out_shape=jax.ShapeDtypeStruct((M, Ep), out_dtype),
        grid_spec=pltpu.PrefetchScalarGridSpec(
            num_scalar_prefetch=0,
            grid=grid,
            in_specs=[
                pl.BlockSpec((tm, Kp), lambda i: (i, 0)),
                pl.BlockSpec((Kp, Ep), lambda i: (0, 0)),
                pl.BlockSpec((1, Ep), lambda i: (0, 0)),
            ],
            out_specs=pl.BlockSpec((tm, Ep), lambda i: (i, 0)),
        ),
        compiler_params=pltpu.CompilerParams(
            dimension_semantics=("parallel",),
            allow_input_fusion=[True, False, False],
            vmem_limit_bytes=32 * 1024 * 1024,
        ),
        cost_estimate=cost,
    )(patches, w_mat, b_mat)

    if Ep != E:
        out = out[:, :E]
    return out.reshape(B, num_patches, E)


def reference_patch_embedding(im, weight, bias, patch_size):
    """Pure-JAX f32 reference using lax.conv_general_dilated (== nn.Conv2d stride=P)."""
    out = jax.lax.conv_general_dilated(
        im, weight,
        window_strides=(patch_size, patch_size),
        padding="VALID",
        dimension_numbers=("NCHW", "OIHW", "NCHW"),
    )  # (B, E, gh, gw)
    out = out + bias[None, :, None, None]
    B, E, gh, gw = out.shape
    return out.reshape(B, E, gh * gw).transpose(0, 2, 1)


if __name__ == "__main__":
    # Small shapes consistent with the module:
    # image_size=(16, 16), patch_size=4, embed_dim=32, channels=4, batch=2
    B, C, H, W = 2, 4, 16, 16
    P, E = 4, 32

    key = jax.random.PRNGKey(0)
    k_im, k_w, k_b = jax.random.split(key, 3)

    im = jax.random.normal(k_im, (B, C, H, W), dtype=jnp.float32)
    weight = jax.random.normal(k_w, (E, C, P, P), dtype=jnp.float32) * 0.02
    bias = jax.random.normal(k_b, (E,), dtype=jnp.float32) * 0.02

    out = jax.block_until_ready(patch_embedding(im, weight, bias, P))
    ref = reference_patch_embedding(im, weight, bias, P)

    assert out.shape == (B, (H // P) * (W // P), E), out.shape
    assert out.dtype == im.dtype, out.dtype
    # bf16 MXU compute with f32 accumulation vs f32 reference -> loose tolerance
    assert jnp.allclose(out, ref, atol=2e-2, rtol=2e-2), "mismatch vs conv reference"

    print("KERNEL_OK")
</pallas_src>

<mosaic_0001>
module attributes {stable_mosaic.version = 11 : i64} {
  func.func @_patch_embed_kernel(%arg0: i32, %arg1: memref<16x128xbf16, #tpu.memory_space<vmem>>, %arg2: memref<128x128xbf16, #tpu.memory_space<vmem>>, %arg3: memref<1x128xf32, #tpu.memory_space<vmem>>, %arg4: memref<16x128xf32, #tpu.memory_space<vmem>>) attributes {dimension_semantics = [#tpu.dimension_semantics<parallel>], iteration_bounds = array<i64: 2>, scalar_prefetch = 0 : i64, scratch_operands = 0 : i64, tpu.core_type = #tpu.core_type<tc>, window_params = [{transform_indices = @transform_0, window_bounds = array<i64: 16, 128>}, {pipeline_mode = #tpu.pipeline_mode<synchronous>, transform_indices = @transform_1, window_bounds = array<i64: 128, 128>}, {pipeline_mode = #tpu.pipeline_mode<synchronous>, transform_indices = @transform_2, window_bounds = array<i64: 1, 128>}, {transform_indices = @transform_3, window_bounds = array<i64: 16, 128>}]} {
    %c0 = arith.constant 0 : index
    %c0_0 = arith.constant 0 : index
    %0 = vector.load %arg1[%c0, %c0_0] : memref<16x128xbf16, #tpu.memory_space<vmem>>, vector<16x128xbf16>
    %c0_1 = arith.constant 0 : index
    %c0_2 = arith.constant 0 : index
    %1 = vector.load %arg2[%c0_1, %c0_2] : memref<128x128xbf16, #tpu.memory_space<vmem>>, vector<128x128xbf16>
    %cst = arith.constant dense<0.000000e+00> : vector<16x128xf32>
    %2 = tpu.matmul %0, %1, %cst {dimension_numbers = #tpu.dot_dimension_numbers<[1], [0], [0], [1], [0, 0, 1, 1], [], []>} : vector<16x128xbf16>, vector<128x128xbf16>, vector<16x128xf32> -> vector<16x128xf32>
    %c0_3 = arith.constant 0 : index
    %c0_4 = arith.constant 0 : index
    %3 = vector.load %arg3[%c0_3, %c0_4] : memref<1x128xf32, #tpu.memory_space<vmem>>, vector<1x128xf32>
    %4 = vector.broadcast %3 : vector<1x128xf32> to vector<16x128xf32>
    %5 = arith.addf %2, %4 : vector<16x128xf32>
    %c0_5 = arith.constant 0 : index
    %c0_6 = arith.constant 0 : index
    %6 = vector.load %arg4[%c0_5, %c0_6] : memref<16x128xf32, #tpu.memory_space<vmem>>, vector<16x128xf32>
    tpu.vector_store %arg4[%c0_5, %c0_6], %5 {strides = array<i32>} : memref<16x128xf32, #tpu.memory_space<vmem>>, vector<16x128xf32>,
    return
  }
  func.func @transform_0(%arg0: i32) -> (i32, i32) {
    %c0_i32 = arith.constant 0 : i32
    %c0_i32_0 = arith.constant 0 : i32
    return %arg0, %c0_i32 : i32, i32
  }
  func.func @transform_1(%arg0: i32) -> (i32, i32) {
    %c0_i32 = arith.constant 0 : i32
    %c0_i32_0 = arith.constant 0 : i32
    %c0_i32_1 = arith.constant 0 : i32
    return %c0_i32, %c0_i32_0 : i32, i32
  }
  func.func @transform_2(%arg0: i32) -> (i32, i32) {
    %c0_i32 = arith.constant 0 : i32
    %c0_i32_0 = arith.constant 0 : i32
    %c0_i32_1 = arith.constant 0 : i32
    return %c0_i32, %c0_i32_0 : i32, i32
  }
  func.func @transform_3(%arg0: i32) -> (i32, i32) {
    %c0_i32 = arith.constant 0 : i32
    %c0_i32_0 = arith.constant 0 : i32
    return %arg0, %c0_i32 : i32, i32
  }
}

</mosaic_0001>

<llo_original>
// kernel: tpu_custom_call.1
$region0: #{tpu_custom_call.1}
  #allocation0 [shape = 'u32[]', space=smem, size = 0x4, offset = 0x4, fixed_abs, tag = 'smem constant byte address 0x4 - core index']
  #allocation1 [shape = 'u32[72,128]{1,0:T(1,128)}', space=vmem, size = 0x9000, scoped, tag = 'internal scratch']
  %s0 = inlined_call_operand.hbm [shape: bf16[32,128], index: 0, kind: input, shape index: {}]
  %s1 = inlined_call_operand.hbm [shape: bf16[128,128], index: 1, kind: input, shape index: {}]
  %s2 = inlined_call_operand.vmem [shape: f32[1,128], index: 2, kind: input, shape index: {}]
  %s3 = inlined_call_operand.hbm [shape: f32[32,128], index: 3, kind: output, shape index: {}]
  %s4 = sld [smem:[#allocation0]]
  $region53: #{tpu_custom_call.1} parent=0
    _
  %s6 = ssub.s32 1, %s4
  %s7 = scalar_select 0, %s6, %s4
  $region1: #{tpu_custom_call.1} parent=0
    #allocation2 [shape = 'u8[8192]{0}', space=vmem, size = 0x2000, scoped, tag = 'input window, operand 0']
    #allocation3 [shape = 's32[2]{0}', space=sflag, size = 0x8, scoped, tag = 'scoped memory for tpu_custom_call.1']
    #allocation4 [shape = 's32[2]{0}', space=sflag, size = 0x8, scoped, tag = 'scoped memory for tpu_custom_call.1']
    #allocation5 [shape = 'u8[32768]{0}', space=vmem, size = 0x8000, scoped, tag = 'input window, operand 1, single buffered']
    #allocation6 [shape = 's32[1]{0}', space=sflag, size = 0x4, scoped, tag = 'scoped memory for tpu_custom_call.1']
    #allocation7 [shape = 'u8[16384]{0}', space=vmem, size = 0x4000, scoped, tag = 'output window, operand 0']
    %8 = vsyncpa [#allocation3], 0
    %s9 = scalar_lea.sflag [#allocation3], 1
    %10 = vsyncpa %s9, 0
    %11 = vsyncpa [#allocation6], 0
    %12 = vsyncpa [#allocation4], 0
    %s13 = scalar_lea.sflag [#allocation4], 1
    %14 = vsyncpa %s13, 0
    loop: start=0, step=1, limit=4
    $region2: #{tpu_custom_call.1} parent=1 // loop_pre_header
      _
    $region3: #{tpu_custom_call.1} parent=1 // loop_header
      %s16 = sphi 0, %s20
      %p17 = scmp.ge.s32.totalorder %s16, 4
      %s26 = sphi 0, %s28
      %s29 = sphi 0, %s26
      %s30 = sphi 0, %s29
      %s46 = sphi 0, %s30
      %s50 = sphi 0, %s50
      %s52 = sphi 0, %s50
      %s53 = sphi 0, %s52
      %s67 = sphi 0, %s53
      %s71 = sphi 0, %s71
      %s73 = sphi 0, %s71
      %s74 = sphi 0, %s73
      %s88 = sphi 0, %s74
      %s94 = sphi 0, %s96
      %s97 = sphi 0, %s94
      %s98 = sphi 0, %s97
      %s114 = sphi 0, %s98
    $region4: #{tpu_custom_call.1} parent=1 // loop_header_branch
      %19 = sbr.rel (%p17) target = $region8
    $region5: #{tpu_custom_call.1} parent=1 // loop_body
      %s21 = ssub.s32 %s16, 1
      %s22 = ssub.s32 %s16, 2
      %s23 = sadd.s32 %s16, 1
      %s24 = ssub.s32 %s16, %s23
      %p25 = scmp.eq.s32.totalorder %s24, 0
      %s27 = sadd.s32 %s26, 1
      %s28 = scalar_select %p25, %s26, %s27
      %p31 = pneg %p25
      %p32 = scmp.eq.s32.totalorder %s16, 1
      %p33 = por %p31, %p32
      %p34 = scmp.ne.s32.totalorder %s26, %s29
      %p35 = scmp.eq.s32.totalorder %s16, 0
      %p36 = por %p34, %p35
      %p37 = scmp.ne.s32.totalorder %s26, %s29
      %p38 = scmp.eq.s32.totalorder %s21, 1
      %p39 = por %p37, %p38
      %p40 = scmp.ne.s32.totalorder %s29, %s30
      %p41 = scmp.eq.s32.totalorder %s21, 0
      %p42 = por %p40, %p41
      %p43 = scmp.ne.s32.totalorder %s29, %s30
      %p44 = scmp.eq.s32.totalorder %s22, 1
      %p45 = por %p43, %p44
      %p47 = scmp.ne.s32.totalorder %s30, %s46
      %p48 = scmp.eq.s32.totalorder %s22, 0
      %p49 = por %p47, %p48
      %s51 = sadd.s32 %s50, 1
      %p54 = scmp.eq.s32.totalorder %s16, 1
      %p55 = scmp.ne.s32.totalorder %s50, %s52
      %p56 = scmp.eq.s32.totalorder %s16, 0
      %p57 = por %p55, %p56
      %p58 = scmp.ne.s32.totalorder %s50, %s52
      %p59 = scmp.eq.s32.totalorder %s21, 1
      %p60 = por %p58, %p59
      %p61 = scmp.ne.s32.totalorder %s52, %s53
      %p62 = scmp.eq.s32.totalorder %s21, 0
      %p63 = por %p61, %p62
      %p64 = scmp.ne.s32.totalorder %s52, %s53
      %p65 = scmp.eq.s32.totalorder %s22, 1
      %p66 = por %p64, %p65
      %p68 = scmp.ne.s32.totalorder %s53, %s67
      %p69 = scmp.eq.s32.totalorder %s22, 0
      %p70 = por %p68, %p69
      %s72 = sadd.s32 %s71, 1
      %p75 = scmp.eq.s32.totalorder %s16, 1
      %p76 = scmp.ne.s32.totalorder %s71, %s73
      %p77 = scmp.eq.s32.totalorder %s16, 0
      %p78 = por %p76, %p77
      %p79 = scmp.ne.s32.totalorder %s71, %s73
      %p80 = scmp.eq.s32.totalorder %s21, 1
      %p81 = por %p79, %p80
      %p82 = scmp.ne.s32.totalorder %s73, %s74
      %p83 = scmp.eq.s32.totalorder %s21, 0
      %p84 = por %p82, %p83
      %p85 = scmp.ne.s32.totalorder %s73, %s74
      %p86 = scmp.eq.s32.totalorder %s22, 1
      %p87 = por %p85, %p86
      %p89 = scmp.ne.s32.totalorder %s74, %s88
      %p90 = scmp.eq.s32.totalorder %s22, 0
      %p91 = por %p89, %p90
      %s92 = ssub.s32 %s16, %s23
      %p93 = scmp.eq.s32.totalorder %s92, 0
      %s95 = sadd.s32 %s94, 1
      %s96 = scalar_select %p93, %s94, %s95
      %p99 = pneg %p93
      %p100 = scmp.eq.s32.totalorder %s16, 1
      %p101 = por %p99, %p100
      %p102 = scmp.ne.s32.totalorder %s94, %s97
      %p103 = scmp.eq.s32.totalorder %s16, 0
      %p104 = por %p102, %p103
      %p105 = scmp.ne.s32.totalorder %s94, %s97
      %p106 = scmp.eq.s32.totalorder %s21, 1
      %p107 = por %p105, %p106
      %p108 = scmp.ne.s32.totalorder %s97, %s98
      %p109 = scmp.eq.s32.totalorder %s21, 0
      %p110 = por %p108, %p109
      %p111 = scmp.ne.s32.totalorder %s97, %s98
      %p112 = scmp.eq.s32.totalorder %s22, 1
      %p113 = por %p111, %p112
      %p115 = scmp.ne.s32.totalorder %s98, %s114
      %p116 = scmp.eq.s32.totalorder %s22, 0
      %p117 = por %p115, %p116
      %p118 = scmp.le.s32.totalorder 1, %s16
      %p119 = scmp.lt.s32.totalorder %s16, 3
      %p120 = pnand %p118, %p119
      %p121 = pneg %p120
      // Predicated region
      $region9: #{tpu_custom_call.1} parent=5 // pred_check
        _
      $region10: #{tpu_custom_call.1} parent=5 // pred_check_branch
        %123 = sbr.rel (%p120) target = $region12
      $region11: #{tpu_custom_call.1} parent=5 // pred_region
        %s124 = ssub.s32 %s16, 1
        // Predicated region
        $region13: #{tpu_custom_call.1} parent=11 // pred_check
          %p125 = pneg %p63
        $region14: #{tpu_custom_call.1} parent=11 // pred_check_branch
          %127 = sbr.rel (%p125) target = $region16
        $region15: #{tpu_custom_call.1} parent=11 // pred_region
          %129 = vsyncadd [#allocation6], 0
          %s130 = sshll.u32 %s1, 4
          %s131 = int_to_ptr.hbm [resolvable:$true] %s130
          %s132 = sshll.u32 [#allocation5], 4
          %s133 = int_to_ptr.vmem [resolvable:$true] %s132
          %138 = dma.hbm_to_vmem [thread:$0]  %s131, 1024, %s133, [#allocation6], 64, 64, 4
        $region16: #{tpu_custom_call.1} parent=11 // pred_fallthru
          _
        // Predicated region
        $region17: #{tpu_custom_call.1} parent=11 // pred_check
          %p139 = pneg %p84
        $region18: #{tpu_custom_call.1} parent=11 // pred_check_branch
          %141 = sbr.rel (%p139) target = $region20
        $region19: #{tpu_custom_call.1} parent=11 // pred_region
          _
        $region20: #{tpu_custom_call.1} parent=11 // pred_fallthru
          _
      $region12: #{tpu_custom_call.1} parent=5 // pred_fallthru
        _
      %p142 = scmp.lt.s32.totalorder %s16, 2
      // Predicated region
      $region21: #{tpu_custom_call.1} parent=5 // pred_check
        %p143 = pneg %p142
      $region22: #{tpu_custom_call.1} parent=5 // pred_check_branch
        %145 = sbr.rel (%p143) target = $region24
      $region23: #{tpu_custom_call.1} parent=5 // pred_region
        // Predicated region
        $region25: #{tpu_custom_call.1} parent=23 // pred_check
          %p146 = pneg %p36
        $region26: #{tpu_custom_call.1} parent=23 // pred_check_branch
          %148 = sbr.rel (%p146) target = $region28
        $region27: #{tpu_custom_call.1} parent=23 // pred_region
          %s149 = sand.u32 %s26, 1
          %s150 = scalar_lea.sflag [#allocation3], %s149
          %s151 = sand.u32 %s26, 1
          %s152 = smul.addr %s151, 8
          %s153 = scalar_lea.vmem [#allocation2], %s152
          %s154 = smul.u32 2, %s16
          %156 = vsyncadd %s150, 0
          %s157 = smul.addr %s154, 4
          %s158 = scalar_lea.hbm %s0, %s157
          %s159 = sshll.u32 %s158, 4
          %s160 = int_to_ptr.hbm [resolvable:$true] %s159
          %s161 = sshll.u32 %s153, 4
          %s162 = int_to_ptr.vmem [resolvable:$true] %s161
          %167 = dma.hbm_to_vmem [thread:$0]  %s160, 128, %s162, %s150, 64, 64, 4
        $region28: #{tpu_custom_call.1} parent=23 // pred_fallthru
          _
      $region24: #{tpu_custom_call.1} parent=5 // pred_fallthru
        _
      %p168 = scmp.le.s32.totalorder 1, %s16
      %p169 = scmp.lt.s32.totalorder %s16, 3
      %p170 = pnand %p168, %p169
      %p171 = pneg %p170
      // Predicated region
      $region29: #{tpu_custom_call.1} parent=5 // pred_check
        _
      $region30: #{tpu_custom_call.1} parent=5 // pred_check_branch
        %173 = sbr.rel (%p170) target = $region32
      $region31: #{tpu_custom_call.1} parent=5 // pred_region
        %s174 = ssub.s32 %s16, 1
        %s175 = sand.u32 %s29, 1
        %s176 = scalar_lea.sflag [#allocation3], %s175
        %s177 = sand.u32 %s29, 1
        %s178 = smul.addr %s177, 8
        %s179 = scalar_lea.vmem [#allocation2], %s178
        // Predicated region
        $region33: #{tpu_custom_call.1} parent=31 // pred_check
          %p180 = pneg %p42
        $region34: #{tpu_custom_call.1} parent=31 // pred_check_branch
          %182 = sbr.rel (%p180) target = $region36
        $region35: #{tpu_custom_call.1} parent=31 // pred_region
          %184 = dma.done %s176, 128
        $region36: #{tpu_custom_call.1} parent=31 // pred_fallthru
          _
        // Predicated region
        $region37: #{tpu_custom_call.1} parent=31 // pred_check
          %p185 = pneg %p63
        $region38: #{tpu_custom_call.1} parent=31 // pred_check_branch
          %187 = sbr.rel (%p185) target = $region40
        $region39: #{tpu_custom_call.1} parent=31 // pred_region
          %189 = dma.done [#allocation6], 1024
        $region40: #{tpu_custom_call.1} parent=31 // pred_fallthru
          _
        %s190 = sand.u32 %s29, 1
        %s191 = scalar_lea.sflag [#allocation3], %s190
        %s192 = sand.u32 %s29, 1
        %s193 = smul.addr %s192, 8
        %s194 = scalar_lea.vmem [#allocation2], %s193
        %p195 = pneg %p42
        %p196 = pneg %p39
        %p197 = pneg %p63
        %p198 = pneg %p60
        %p199 = pneg %p84
        %p200 = pneg %p81
        %p201 = pneg %p110
        %p202 = pneg %p107
        %s203 = sand.u32 %s97, 1
        %s204 = scalar_lea.sflag [#allocation4], %s203
        %s205 = sand.u32 %s97, 1
        %s206 = smul.addr %s205, 16
        %s207 = scalar_lea.vmem [#allocation7], %s206
        %s208 = smul.u32 2, %s21
        %s209 = smul.u32 2, %s21
        %v210 = vld [vmem:[%s179] sm:$0xf]
        %v211 = vld [vmem:[%s179 + $0x4] sm:$0xf]
        %v212 = vld [vmem:[#allocation5] sm:$0xf]
        %v213 = vld [vmem:[#allocation5 + $0x4] sm:$0xf]
        %v214 = vld [vmem:[#allocation5 + $0x8] sm:$0xf]
        %v215 = vld [vmem:[#allocation5 + $0xc] sm:$0xf]
        %v216 = vld [vmem:[#allocation5 + $0x10] sm:$0xf]
        %v217 = vld [vmem:[#allocation5 + $0x14] sm:$0xf]
        %v218 = vld [vmem:[#allocation5 + $0x18] sm:$0xf]
        %v219 = vld [vmem:[#allocation5 + $0x1c] sm:$0xf]
        %v220 = vld [vmem:[#allocation5 + $0x20] sm:$0xf]
        %v221 = vld [vmem:[#allocation5 + $0x24] sm:$0xf]
        %v222 = vld [vmem:[#allocation5 + $0x28] sm:$0xf]
        %v223 = vld [vmem:[#allocation5 + $0x2c] sm:$0xf]
        %v224 = vld [vmem:[#allocation5 + $0x30] sm:$0xf]
        %v225 = vld [vmem:[#allocation5 + $0x34] sm:$0xf]
        %v226 = vld [vmem:[#allocation5 + $0x38] sm:$0xf]
        %v227 = vld [vmem:[#allocation5 + $0x3c] sm:$0xf]
        %v228 = vld [vmem:[%s2] sm:$0x1]
        %v230 = vperm.slane %v228, 0
        %v234 = vunpack.c.l.b16 %v210
        %v235 = vunpack.c.l.b16 %v211
        %v236 = vpack.c.b16 %v235, %v234
        %v254 = vunpack.c.l.b16 %v212
        %v255 = vunpack.c.l.b16 %v213
        %v256 = vunpack.c.l.b16 %v214
        %v257 = vunpack.c.l.b16 %v215
        %v258 = vunpack.c.l.b16 %v216
        %v259 = vunpack.c.l.b16 %v217
        %v260 = vunpack.c.l.b16 %v218
        %v261 = vunpack.c.l.b16 %v219
        %v262 = vunpack.c.l.b16 %v220
        %v263 = vunpack.c.l.b16 %v221
        %v264 = vunpack.c.l.b16 %v222
        %v265 = vunpack.c.l.b16 %v223
        %v266 = vunpack.c.l.b16 %v224
        %v267 = vunpack.c.l.b16 %v225
        %v268 = vunpack.c.l.b16 %v226
        %v269 = vunpack.c.l.b16 %v227
        %v270 = vpack.c.b16 %v255, %v254
        %v271 = vpack.c.b16 %v257, %v256
        %v272 = vpack.c.b16 %v259, %v258
        %v273 = vpack.c.b16 %v261, %v260
        %v274 = vpack.c.b16 %v263, %v262
        %v275 = vpack.c.b16 %v265, %v264
        %v276 = vpack.c.b16 %v267, %v266
        %v277 = vpack.c.b16 %v269, %v268
        %286 = vmatpush.bf16.msra.mxu0 %v277
        %287 = vmatpush.bf16.msra.mxu0 %v276
        %288 = vmatpush.bf16.msra.mxu0 %v275
        %289 = vmatpush.bf16.msra.mxu0 %v274
        %290 = vmatpush.bf16.msra.mxu0 %v273
        %291 = vmatpush.bf16.msra.mxu0 %v272
        %292 = vmatpush.bf16.msra.mxu0 %v271
        %293 = vmatpush.bf16.msra.mxu0 %v270
        %294 = vmatmul.bf16.gmra.mxu0 %v236
        %v295 = vpop.f32.mrf.mxu0
        %v296 = vadd.f32 %v230, %v295
        %v297 = vpop.f32.mrf.mxu0
        %v298 = vadd.f32 %v230, %v297
        %299 = vdwg.mxu0
        %300 = vst [vmem:[%s207] sm:$0xff] %v296
        %301 = vst [vmem:[%s207 + $0x8] sm:$0xff] %v298
        %s302 = sand.u32 %s97, 1
        %s303 = scalar_lea.sflag [#allocation4], %s302
        %s304 = sand.u32 %s97, 1
        %s305 = smul.addr %s304, 16
        %s306 = scalar_lea.vmem [#allocation7], %s305
        // Predicated region
        $region41: #{tpu_custom_call.1} parent=31 // pred_check
          %p307 = pneg %p107
        $region42: #{tpu_custom_call.1} parent=31 // pred_check_branch
          %309 = sbr.rel (%p307) target = $region44
        $region43: #{tpu_custom_call.1} parent=31 // pred_region
          %s310 = smul.u32 2, %s21
          %312 = vsyncadd %s303, 0
          %s313 = smul.addr %s310, 8
          %s314 = scalar_lea.hbm %s3, %s313
          %s315 = sshll.u32 %s306, 4
          %s316 = int_to_ptr.vmem [resolvable:$true] %s315
          %s317 = sshll.u32 %s314, 4
          %s318 = int_to_ptr.hbm [resolvable:$true] %s317
          %323 = dma.vmem_to_hbm [thread:$0]  %s316, 256, %s318, %s303, 128, 128, 8
        $region44: #{tpu_custom_call.1} parent=31 // pred_fallthru
          _
      $region32: #{tpu_custom_call.1} parent=5 // pred_fallthru
        _
      %p324 = scmp.le.s32.totalorder 2, %s16
      // Predicated region
      $region45: #{tpu_custom_call.1} parent=5 // pred_check
        %p325 = pneg %p324
      $region46: #{tpu_custom_call.1} parent=5 // pred_check_branch
        %327 = sbr.rel (%p325) target = $region48
      $region47: #{tpu_custom_call.1} parent=5 // pred_region
        %s328 = ssub.s32 %s16, 2
        // Predicated region
        $region49: #{tpu_custom_call.1} parent=47 // pred_check
          %p329 = pneg %p113
        $region50: #{tpu_custom_call.1} parent=47 // pred_check_branch
          %331 = sbr.rel (%p329) target = $region52
        $region51: #{tpu_custom_call.1} parent=47 // pred_region
          %s332 = sand.u32 %s98, 1
          %s333 = scalar_lea.sflag [#allocation4], %s332
          %s334 = sand.u32 %s98, 1
          %s335 = smul.addr %s334, 16
          %s336 = scalar_lea.vmem [#allocation7], %s335
          %338 = dma.done %s333, 256
        $region52: #{tpu_custom_call.1} parent=47 // pred_fallthru
          _
      $region48: #{tpu_custom_call.1} parent=5 // pred_fallthru
        _
    $region6: #{tpu_custom_call.1} parent=1 // loop_footer
      %s20 = sadd.s32 1, %s16
    $region7: #{tpu_custom_call.1} parent=1 // loop_footer_branch
      %15 = sbr.rel target = $region3
    $region8: #{tpu_custom_call.1} parent=1 // loop_exit
      _
    %339 = vsyncpa [#allocation3], 1
    %s340 = scalar_lea.sflag [#allocation3], 1
    %341 = vsyncpa %s340, 1
    %342 = vsyncpa [#allocation6], 1
    %343 = vsyncpa [#allocation4], 1
    %s344 = scalar_lea.sflag [#allocation4], 1
    %345 = vsyncpa %s344, 1

</llo_original>
